<compile_context>
chip_gen: v7x
topology: tpu7x:2x2x1
jax: 0.10.0
libtpu: 0.0.40
codegen_flags: <defaults>
</compile_context>

<pallas_src>
import functools

import jax
import jax.numpy as jnp
import numpy as np
from jax import lax
from jax.experimental import pallas as pl
from jax.experimental.pallas import tpu as pltpu


def _focal_loss_kernel(*refs, gamma, reduction, n_total, tile_n, has_alpha):
    if has_alpha:
        logits_ref, targets_ref, at_ref, out_ref = refs
    else:
        logits_ref, targets_ref, out_ref = refs
        at_ref = None

    logits = logits_ref[...].astype(jnp.float32)   # (T, C)
    tgt = targets_ref[...]                         # (T, 1) int32
    t, c = logits.shape

    # Numerically stable log-sum-exp over the class (lane) axis.
    m = jnp.max(logits, axis=-1, keepdims=True)                               # (T, 1)
    lse = m + jnp.log(jnp.sum(jnp.exp(logits - m), axis=-1, keepdims=True))   # (T, 1)

    # Select-reduce pick of the target logit (no bool->f32 cast, no extra
    # (T, C) multiply).
    cls_ids = lax.broadcasted_iota(jnp.int32, (t, c), 1)
    tgt_logit = jnp.sum(jnp.where(cls_ids == tgt, logits, 0.0),
                        axis=-1, keepdims=True)                               # (T, 1)

    ce = lse - tgt_logit                     # per-sample cross entropy, (T, 1)
    pt = jnp.exp(-ce)
    omp = jnp.maximum(1.0 - pt, 0.0)         # guard fp round-off before the power

    if float(gamma) == 1.5:
        focal = omp * jnp.sqrt(omp)          # avoids exp(gamma*log(x)) lowering of pow
    elif float(gamma) == float(int(gamma)) and int(gamma) >= 0:
        focal = omp ** int(gamma)
    else:
        focal = jnp.power(omp, gamma)

    loss = focal * ce                        # (T, 1)
    if has_alpha:
        loss = at_ref[...].astype(jnp.float32) * loss

    if reduction in ("mean", "sum"):
        i = pl.program_id(0)
        # Mask padded tail rows against the GLOBAL row count (garbage rows may
        # be NaN, so use a select rather than a multiply).
        row = lax.broadcasted_iota(jnp.int32, (t, 1), 0) + i * tile_n
        loss = jnp.where(row < n_total, loss, 0.0)
        # Per-tile partial sum; the wrapper does the final reduction.
        out_ref[...] = jnp.sum(loss, keepdims=True)          # (1, 1)
    else:
        out_ref[...] = loss                  # padded tail rows are not written back


def _vmem_capacity_bytes():
    try:
        return int(pltpu.get_tpu_info().vmem_capacity_bytes)
    except Exception:
        return 64 * 1024 * 1024              # conservative (v7x-sized) fallback


def _choose_tile_n(n, c, itemsize, vmem_cap):
    # Size the row tile by bytes: ~vmem/4 (capped at 32 MiB) of double-buffered
    # logits per grid step.  No artificial row cap beyond 32768.
    budget = min(vmem_cap // 4, 32 * 1024 * 1024)
    per_row = max(1, 2 * c * itemsize)       # x2 for double buffering
    t = budget // per_row
    t = int(max(8, min(t, 32768)))
    t -= t % 8                               # sublane alignment
    t = max(t, 8)
    if n <= t:
        return n                             # single tile; block == full array dims
    return t


def focal_loss(logits, targets, alpha=None, gamma=1.5, reduction="mean", tile_n=None):
    """Pallas TPU focal loss.

    logits:  (N, C) float32/bfloat16
    targets: (N,)   int class indices in [0, C)
    alpha:   optional (C,) per-class weights
    """
    logits = jnp.asarray(logits)
    n, c = logits.shape
    targets_i32 = jnp.asarray(targets, dtype=jnp.int32)
    targets2d = targets_i32.reshape(n, 1)

    has_alpha = alpha is not None
    vmem_cap = _vmem_capacity_bytes()
    if tile_n is None:
        tile_n = _choose_tile_n(n, c, logits.dtype.itemsize, vmem_cap)
    tile_n = int(min(tile_n, n))
    if tile_n < n:
        tile_n = max(8, tile_n - tile_n % 8)  # keep the (8,128) block constraint
    num_tiles = int(pl.cdiv(n, tile_n))

    in_specs = [
        pl.BlockSpec((tile_n, c), lambda i: (i, 0)),
        pl.BlockSpec((tile_n, 1), lambda i: (i, 0)),
    ]
    inputs = [logits, targets2d]
    if has_alpha:
        # Hoist the per-class gather out of the kernel: alpha[targets] is (N,).
        at = jnp.asarray(alpha, dtype=jnp.float32)[targets_i32].reshape(n, 1)
        inputs.append(at)
        in_specs.append(pl.BlockSpec((tile_n, 1), lambda i: (i, 0)))

    if reduction in ("mean", "sum"):
        # Per-tile partial sums; "parallel" axis so both v7x TensorCores share
        # the reduction.  Final sum (and divide for 'mean') happens below.
        out_shape = jax.ShapeDtypeStruct((num_tiles, 1), jnp.float32)
        out_spec = pl.BlockSpec((1, 1), lambda i: (i, 0))
    else:
        out_shape = jax.ShapeDtypeStruct((n, 1), jnp.float32)
        out_spec = pl.BlockSpec((tile_n, 1), lambda i: (i, 0))
    dim_sem = ("parallel",)

    vmem_limit = int(min(max(3 * vmem_cap // 4, 32 * 1024 * 1024),
                         96 * 1024 * 1024))

    kernel = functools.partial(
        _focal_loss_kernel,
        gamma=float(gamma),
        reduction=reduction,
        n_total=n,
        tile_n=tile_n,
        has_alpha=has_alpha,
    )

    out = pl.pallas_call(
        kernel,
        out_shape=out_shape,
        grid=(num_tiles,),
        in_specs=in_specs,
        out_specs=out_spec,
        compiler_params=pltpu.CompilerParams(
            dimension_semantics=dim_sem,
            vmem_limit_bytes=vmem_limit,
        ),
    )(*inputs)

    if reduction == "sum":
        return jnp.sum(out)
    if reduction == "mean":
        # torch loss.mean() divides by the full N (all rows).
        return jnp.sum(out) / jnp.float32(n)
    return out[:, 0]


def _focal_loss_ref(logits, targets, alpha=None, gamma=1.5, reduction="mean"):
    # Pure-JAX reference mirroring torch cross_entropy(reduction='none') + focal term.
    logp = jax.nn.log_softmax(logits.astype(jnp.float32), axis=-1)
    ce = -jnp.take_along_axis(logp, targets[:, None], axis=-1)[:, 0]
    pt = jnp.exp(-ce)
    if alpha is not None:
        at = jnp.asarray(alpha, dtype=jnp.float32)[targets]
        loss = at * (1.0 - pt) ** gamma * ce
    else:
        loss = (1.0 - pt) ** gamma * ce
    if reduction == "mean":
        return loss.mean()
    if reduction == "sum":
        return loss.sum()
    return loss


if __name__ == "__main__":
    key = jax.random.PRNGKey(0)
    k1, k2, k3 = jax.random.split(key, 3)

    # Default module config: alpha=None, gamma=1.5, reduction='mean'.
    N, C = 8, 32
    logits = jax.random.normal(k1, (N, C), dtype=jnp.float32)
    targets = jax.random.randint(k2, (N,), 0, C, dtype=jnp.int32)

    out = jax.block_until_ready(
        focal_loss(logits, targets, alpha=None, gamma=1.5, reduction="mean"))
    ref = _focal_loss_ref(logits, targets, None, 1.5, "mean")
    np.testing.assert_allclose(np.asarray(out), np.asarray(ref), rtol=1e-5, atol=1e-5)

    # Multi-tile path with a tail tile (masking), per-class alpha, sum reduction.
    N2, C2 = 100, 32
    k4, k5 = jax.random.split(k3)
    logits2 = jax.random.normal(k4, (N2, C2), dtype=jnp.float32)
    targets2 = jax.random.randint(k5, (N2,), 0, C2, dtype=jnp.int32)
    alpha2 = jnp.linspace(0.5, 1.5, C2, dtype=jnp.float32)

    out2 = jax.block_until_ready(
        focal_loss(logits2, targets2, alpha=alpha2, gamma=1.5, reduction="sum", tile_n=32))
    ref2 = _focal_loss_ref(logits2, targets2, alpha2, 1.5, "sum")
    np.testing.assert_allclose(np.asarray(out2), np.asarray(ref2), rtol=1e-4, atol=1e-4)

    # Per-sample ('none') path, tiled over N with a parallel grid axis.
    out3 = jax.block_until_ready(
        focal_loss(logits2, targets2, alpha=None, gamma=1.5, reduction="none", tile_n=32))
    ref3 = _focal_loss_ref(logits2, targets2, None, 1.5, "none")
    np.testing.assert_allclose(np.asarray(out3), np.asarray(ref3), rtol=1e-5, atol=1e-5)

    # Auto tile sizing (single big tile) on the multi-row input, mean reduction.
    out4 = jax.block_until_ready(
        focal_loss(logits2, targets2, alpha=alpha2, gamma=1.5, reduction="mean"))
    ref4 = _focal_loss_ref(logits2, targets2, alpha2, 1.5, "mean")
    np.testing.assert_allclose(np.asarray(out4), np.asarray(ref4), rtol=1e-5, atol=1e-5)

    print("KERNEL_OK")
</pallas_src>

<mosaic_0001>
module attributes {stable_mosaic.version = 11 : i64} {
  func.func @_focal_loss_kernel(%arg0: i32, %arg1: memref<8x32xf32, #tpu.memory_space<vmem>>, %arg2: memref<8x1xi32, #tpu.memory_space<vmem>>, %arg3: memref<1x1xf32, #tpu.memory_space<vmem>>) attributes {dimension_semantics = [#tpu.dimension_semantics<parallel>], iteration_bounds = array<i64: 1>, scalar_prefetch = 0 : i64, scratch_operands = 0 : i64, tpu.core_type = #tpu.core_type<tc>, window_params = [{transform_indices = @transform_0, window_bounds = array<i64: 8, 32>}, {transform_indices = @transform_1, window_bounds = array<i64: 8, 1>}, {transform_indices = @transform_2, window_bounds = array<i64: 1, 1>}]} {
    %c0 = arith.constant 0 : index
    %c0_0 = arith.constant 0 : index
    %0 = vector.load %arg1[%c0, %c0_0] : memref<8x32xf32, #tpu.memory_space<vmem>>, vector<8x32xf32>
    %c0_1 = arith.constant 0 : index
    %c0_2 = arith.constant 0 : index
    %1 = vector.load %arg2[%c0_1, %c0_2] : memref<8x1xi32, #tpu.memory_space<vmem>>, vector<8x1xi32>
    %cst = arith.constant dense<0xFF800000> : vector<8xf32>
    %2 = vector.multi_reduction <maximumf>, %0, %cst [1] : vector<8x32xf32> to vector<8xf32>
    %3 = vector.shape_cast %2 : vector<8xf32> to vector<8x1xf32>
    %4 = vector.broadcast %3 : vector<8x1xf32> to vector<8x32xf32>
    %5 = arith.subf %0, %4 : vector<8x32xf32>
    %6 = math.exp %5 : vector<8x32xf32>
    %cst_3 = arith.constant dense<0.000000e+00> : vector<8xf32>
    %7 = vector.multi_reduction <add>, %6, %cst_3 [1] : vector<8x32xf32> to vector<8xf32>
    %8 = vector.shape_cast %7 : vector<8xf32> to vector<8x1xf32>
    %9 = math.log %8 : vector<8x1xf32>
    %10 = arith.addf %3, %9 : vector<8x1xf32>
    %11 = tpu.iota {dimensions = array<i32: 1>} : vector<8x32xi32>
    %12 = vector.broadcast %1 : vector<8x1xi32> to vector<8x32xi32>
    %13 = arith.cmpi eq, %11, %12 : vector<8x32xi32>
    %cst_4 = arith.constant 0.000000e+00 : f32
    %14 = vector.broadcast %cst_4 : f32 to vector<8x32xf32>
    %15 = arith.select %13, %0, %14 : vector<8x32xi1>, vector<8x32xf32>
    %cst_5 = arith.constant dense<0.000000e+00> : vector<8xf32>
    %16 = vector.multi_reduction <add>, %15, %cst_5 [1] : vector<8x32xf32> to vector<8xf32>
    %17 = vector.shape_cast %16 : vector<8xf32> to vector<8x1xf32>
    %18 = arith.subf %10, %17 : vector<8x1xf32>
    %cst_6 = arith.constant 0.000000e+00 : f32
    %19 = vector.broadcast %cst_6 : f32 to vector<8x1xf32>
    %20 = arith.subf %19, %18 : vector<8x1xf32>
    %21 = math.exp %20 : vector<8x1xf32>
    %cst_7 = arith.constant 1.000000e+00 : f32
    %22 = vector.broadcast %cst_7 : f32 to vector<8x1xf32>
    %23 = arith.subf %22, %21 : vector<8x1xf32>
    %cst_8 = arith.constant 0.000000e+00 : f32
    %24 = vector.broadcast %cst_8 : f32 to vector<8x1xf32>
    %25 = arith.maximumf %23, %24 : vector<8x1xf32>
    %26 = math.sqrt %25 : vector<8x1xf32>
    %27 = arith.mulf %25, %26 : vector<8x1xf32>
    %28 = arith.mulf %27, %18 : vector<8x1xf32>
    %29 = tpu.iota {dimensions = array<i32: 0>} : vector<8x1xi32>
    %c8_i32 = arith.constant 8 : i32
    %30 = arith.muli %arg0, %c8_i32 : i32
    %31 = vector.broadcast %30 : i32 to vector<8x1xi32>
    %32 = arith.addi %29, %31 : vector<8x1xi32>
    %c8_i32_9 = arith.constant 8 : i32
    %33 = vector.broadcast %c8_i32_9 : i32 to vector<8x1xi32>
    %34 = arith.cmpi slt, %32, %33 : vector<8x1xi32>
    %cst_10 = arith.constant 0.000000e+00 : f32
    %35 = vector.broadcast %cst_10 : f32 to vector<8x1xf32>
    %36 = arith.select %34, %28, %35 : vector<8x1xi1>, vector<8x1xf32>
    %37 = vector.shape_cast %36 : vector<8x1xf32> to vector<1x8x1xf32>
    %cst_11 = arith.constant dense<0.000000e+00> : vector<1xf32>
    %38 = vector.multi_reduction <add>, %37, %cst_11 [1, 2] : vector<1x8x1xf32> to vector<1xf32>
    %39 = vector.shape_cast %38 : vector<1xf32> to vector<1x1x1xf32>
    %40 = vector.extract %39[0, 0, 0] : f32 from vector<1x1x1xf32>
    %41 = vector.broadcast %40 : f32 to vector<1x1xf32>
    %c0_12 = arith.constant 0 : index
    %c0_13 = arith.constant 0 : index
    %42 = vector.load %arg3[%c0_12, %c0_13] : memref<1x1xf32, #tpu.memory_space<vmem>>, vector<1x1xf32>
    tpu.vector_store %arg3[%c0_12, %c0_13], %41 {strides = array<i32>} : memref<1x1xf32, #tpu.memory_space<vmem>>, vector<1x1xf32>,
    return
  }
  func.func @transform_0(%arg0: i32) -> (i32, i32) {
    %c0_i32 = arith.constant 0 : i32
    %c0_i32_0 = arith.constant 0 : i32
    return %arg0, %c0_i32 : i32, i32
  }
  func.func @transform_1(%arg0: i32) -> (i32, i32) {
    %c0_i32 = arith.constant 0 : i32
    %c0_i32_0 = arith.constant 0 : i32
    return %arg0, %c0_i32 : i32, i32
  }
  func.func @transform_2(%arg0: i32) -> (i32, i32) {
    %c0_i32 = arith.constant 0 : i32
    %c0_i32_0 = arith.constant 0 : i32
    return %arg0, %c0_i32 : i32, i32
  }
}

</mosaic_0001>

<llo_original>
// kernel: tpu_custom_call.1
$region0: #{tpu_custom_call.1}
  #allocation0 [shape = 'u32[]', space=smem, size = 0x4, offset = 0x4, fixed_abs, tag = 'smem constant byte address 0x4 - core index']
  #allocation1 [shape = 'u32[144,128]{1,0:T(1,128)}', space=vmem, size = 0x12000, scoped, tag = 'internal scratch']
  %s0 = inlined_call_operand.vmem [shape: f32[8,32], index: 0, kind: input, shape index: {}]
  %s1 = inlined_call_operand.vmem [shape: s32[8,1], index: 1, kind: input, shape index: {}]
  %s2 = inlined_call_operand.hbm [shape: f32[1,1], index: 2, kind: output, shape index: {}]
  %s3 = sld [smem:[#allocation0]]
  $region18: #{tpu_custom_call.1} parent=0
    _
  %s5 = ssub.s32 1, %s3
  %s6 = scalar_select 0, %s5, %s3
  $region1: #{tpu_custom_call.1} parent=0
    #allocation2 [shape = 'u8[512]{0}', space=vmem, size = 0x400, scoped, tag = 'output window, operand 0, single buffered']
    #allocation3 [shape = 's32[1]{0}', space=sflag, size = 0x4, scoped, tag = 'scoped memory for tpu_custom_call.1']
    %7 = vsyncpa [#allocation3], 0
    // Predicated region
    $region2: #{tpu_custom_call.1} parent=1 // pred_check
      _
    $region3: #{tpu_custom_call.1} parent=1 // pred_check_branch
      %9 = sbr.rel (0) target = $region5
    $region4: #{tpu_custom_call.1} parent=1 // pred_region
      _
    $region5: #{tpu_custom_call.1} parent=1 // pred_fallthru
      _
    // Predicated region
    $region6: #{tpu_custom_call.1} parent=1 // pred_check
      _
    $region7: #{tpu_custom_call.1} parent=1 // pred_check_branch
      %11 = sbr.rel (0) target = $region9
    $region8: #{tpu_custom_call.1} parent=1 // pred_region
      _
    $region9: #{tpu_custom_call.1} parent=1 // pred_fallthru
      _
    %v12 = vld [vmem:[%s0] sm:$0xff]
    %v13 = vld [vmem:[%s1] sm:$0xff]
    %vm14 = vcmask 261120
    %v15 = vsel %vm14, %v12, -inf
    %16 = vmax.xlane.f32.xlu0 %v15
    %v17 = vpop.xlane.xlu0 %16
    %v18 = vsub.f32 %v12, %v17
    %v19 = vmul.f32 %v18, 1.442695
    %v20 = vpow.pop %v19
    %v21 = vsel %vm14, %v20, 0.0
    %22 = vadd.xlane.f32.xlu0 %v21
    %v23 = vpop.xlane.xlu0 %22
    %v24 = vlog2.pop %v23
    %v25 = vmul.f32 %v24, 0.6931472
    %v26 = vadd.f32 %v17, %v25
    %v27 = vlaneseq
    %v28 = vand.u32 %v27, 127
    %29 = vset.pattern.permute.xlu0 0
    %30 = vperm.xlu0 %29, %v13
    %v31 = vpop.permute.xlu0 %30
    %vm32 = vcmp.eq.s32.totalorder %v28, %v31
    %v33 = vsel %vm32, %v12, 0.0
    %v34 = vsel %vm14, %v33, 0.0
    %35 = vadd.xlane.f32.xlu0 %v34
    %v36 = vpop.xlane.xlu0 %35
    %v37 = vsub.f32 %v26, %v36
    %v38 = vsub.f32 0.0, %v37
    %v39 = vmul.f32 %v38, 1.442695
    %v40 = vpow.pop %v39
    %v41 = vsub.f32 1.0, %v40
    %v42 = vmax.f32 %v41, 0.0
    %v43 = vrsqrt.pop %v42
    %v44 = vmul.f32 %v42, %v43
    %vm45 = vcmp.eq.f32.partialorder %v42, inf
    %v46 = vsel %vm45, %v42, %v44
    %vm47 = vcmp.eq.f32.partialorder %v42, 0.0
    %v48 = vand.u32 %v42, 2147483648
    %v49 = vsel %vm47, %v48, %v46
    %v50 = vmul.f32 %v42, %v49
    %v51 = vmul.f32 %v50, %v37
    %v52 = vlaneseq
    %v53 = vshrl.u32 %v52, 7
    %s54 = smul.u32 0, 8
    %v55 = vstv %s54
    %v56 = vadd.s32 %v53, %v55
    %vm57 = vcmp.lt.s32.totalorder %v56, 8
    %v58 = vsel %vm57, %v51, 0.0
    %vm59 = vcmask 7168
    %v60 = vsel %vm59, %v58, 0.0
    %61 = vadd.xlane.f32.xlu0 %v60
    %v62 = vpop.xlane.xlu0 %61
    %v63 = vrot.slane %v62, 4
    %v64 = vadd.f32 %v62, %v63
    %v65 = vrot.slane %v64, 2
    %v66 = vadd.f32 %v64, %v65
    %v67 = vrot.slane %v66, 1
    %v68 = vadd.f32 %v66, %v67
    %s69 = vtos %v68
    %v70 = vstv %s69
    %vm71 = vcmask 0
    %72 = vst.msk [vmem:[#allocation2] sm:$0x1] %vm71, %v70
    // Predicated region
    $region10: #{tpu_custom_call.1} parent=1 // pred_check
      _
    $region11: #{tpu_custom_call.1} parent=1 // pred_check_branch
      %74 = sbr.rel (0) target = $region13
    $region12: #{tpu_custom_call.1} parent=1 // pred_region
      %s76 = ssub.s32 16, 16
      %77 = vsyncadd [#allocation3], %s76
      %s79 = sshll.u32 [#allocation2], 4
      %s80 = int_to_ptr.vmem [resolvable:$true] %s79
      %82 = dma.vmem_to_hbm [thread:$0]  %s80, 16, %s2, [#allocation3]
    $region13: #{tpu_custom_call.1} parent=1 // pred_fallthru
      _
    // Predicated region
    $region14: #{tpu_custom_call.1} parent=1 // pred_check
      _
    $region15: #{tpu_custom_call.1} parent=1 // pred_check_branch
      %84 = sbr.rel (0) target = $region17
    $region16: #{tpu_custom_call.1} parent=1 // pred_region
      %85 = dma.done [#allocation3], 16
    $region17: #{tpu_custom_call.1} parent=1 // pred_fallthru
      _
    %86 = vsyncpa [#allocation3], 1

</llo_original>
